<compile_context>
chip_gen: v6e
topology: v6e:2x2x1
jax: 0.10.0
libtpu: 0.0.40
codegen_flags: <defaults>
</compile_context>

<pallas_src>
import math

import jax
import jax.numpy as jnp
from jax.experimental import pallas as pl
from jax.experimental.pallas import tpu as pltpu


def _same_pad_amounts(in_h, in_w, kernel_size, stride):
    """Replicates the math in Conv2dSamePad.forward (TF 'SAME' semantics)."""
    kh, kw = kernel_size
    sh, sw = stride
    out_h = math.ceil(float(in_h) / float(sh))
    out_w = math.ceil(float(in_w) / float(sw))
    pad_along_h = max((out_h - 1) * sh + kh - in_h, 0)
    pad_along_w = max((out_w - 1) * sw + kw - in_w, 0)
    pad_top = pad_along_h // 2
    pad_left = pad_along_w // 2
    pad_bottom = pad_along_h - pad_top
    pad_right = pad_along_w - pad_left
    return pad_top, pad_bottom, pad_left, pad_right


def _pick_plane_block(nc, per_plane_bytes, target_bytes):
    """Largest divisor of nc whose combined (in+out) tile fits target_bytes,
    while keeping >= 2 grid steps when nc >= 2 (so v7x can use both TCs)."""
    cap = max(1, target_bytes // max(per_plane_bytes, 1))
    if nc >= 2:
        cap = min(cap, nc // 2)  # at least 2 grid iterations
    cap = max(1, min(cap, nc))
    for c in range(cap, 0, -1):
        if nc % c == 0:
            return c
    return 1


def conv2d_same_pad(x, kernel_size, stride):
    """TF-'SAME' zero-pad an NCHW tensor; padding done inside a Pallas kernel.

    The PyTorch module has no parameters — it only pads; the actual Conv2d is
    applied outside the module.
    """
    if not isinstance(kernel_size, (list, tuple)):
        kernel_size = (kernel_size, kernel_size)
    if not isinstance(stride, (list, tuple)):
        stride = (stride, stride)

    n, c, h, w = x.shape
    pad_top, pad_bottom, pad_left, pad_right = _same_pad_amounts(
        h, w, kernel_size, stride
    )

    # Fast path: nothing to pad.
    if pad_top == 0 and pad_bottom == 0 and pad_left == 0 and pad_right == 0:
        return x

    out_h = h + pad_top + pad_bottom
    out_w = w + pad_left + pad_right
    nc = n * c

    # Collapse N and C (free, row-major layout unchanged) and block planes.
    x2 = x.reshape(nc, h, w)

    itemsize = jnp.dtype(x.dtype).itemsize
    per_plane_bytes = (h * w + out_h * out_w) * itemsize
    # ~8 MiB of (in + out) tile per grid step -> ~16 MiB double-buffered,
    # comfortably under the 32 MiB scoped-VMEM default on every generation.
    cblk = _pick_plane_block(nc, per_plane_bytes, 8 * 1024 * 1024)
    grid = (nc // cblk,)

    def pad_kernel(x_ref, o_ref):
        # Build the padded block in registers, then store the whole tile once.
        blk = x_ref[...]  # (cblk, h, w)
        dt = blk.dtype
        if pad_left > 0:
            blk = jnp.concatenate(
                [jnp.zeros((cblk, h, pad_left), dt), blk], axis=2)
        if pad_right > 0:
            blk = jnp.concatenate(
                [blk, jnp.zeros((cblk, h, pad_right), dt)], axis=2)
        if pad_top > 0:
            blk = jnp.concatenate(
                [jnp.zeros((cblk, pad_top, out_w), dt), blk], axis=1)
        if pad_bottom > 0:
            blk = jnp.concatenate(
                [blk, jnp.zeros((cblk, pad_bottom, out_w), dt)], axis=1)
        o_ref[...] = blk  # single, full-tile store

    out2 = pl.pallas_call(
        pad_kernel,
        out_shape=jax.ShapeDtypeStruct((nc, out_h, out_w), x.dtype),
        grid_spec=pltpu.PrefetchScalarGridSpec(
            num_scalar_prefetch=0,
            grid=grid,
            in_specs=[
                pl.BlockSpec((cblk, h, w), lambda i: (i, 0, 0)),
            ],
            out_specs=pl.BlockSpec((cblk, out_h, out_w), lambda i: (i, 0, 0)),
        ),
        compiler_params=pltpu.CompilerParams(
            dimension_semantics=("parallel",),
            vmem_limit_bytes=32 * 1024 * 1024,
        ),
    )(x2)

    return out2.reshape(n, c, out_h, out_w)


if __name__ == "__main__":
    key = jax.random.PRNGKey(0)
    # Small shapes consistent with the module's NCHW forward.
    N, C, H, W = 2, 4, 16, 16
    x = jax.random.normal(key, (N, C, H, W), dtype=jnp.float32)

    def ref_pad(x, ks, st):
        ks = (ks, ks) if not isinstance(ks, (list, tuple)) else tuple(ks)
        st = (st, st) if not isinstance(st, (list, tuple)) else tuple(st)
        pt, pb, plft, prt = _same_pad_amounts(x.shape[2], x.shape[3], ks, st)
        return jnp.pad(x, ((0, 0), (0, 0), (pt, pb), (plft, prt)))

    # Case 1: kernel=3, stride=2 -> asymmetric TF pad (1 on bottom/right only).
    y = jax.block_until_ready(conv2d_same_pad(x, 3, 2))
    y_ref = ref_pad(x, 3, 2)
    assert y.shape == y_ref.shape, (y.shape, y_ref.shape)
    assert jnp.allclose(y, y_ref), "Pallas SAME-pad mismatch (k=3, s=2)"

    # Case 2: kernel=3, stride=1 -> symmetric pad of 1 on each side.
    y2 = jax.block_until_ready(conv2d_same_pad(x, 3, 1))
    y2_ref = ref_pad(x, 3, 1)
    assert y2.shape == y2_ref.shape, (y2.shape, y2_ref.shape)
    assert jnp.allclose(y2, y2_ref), "Pallas SAME-pad mismatch (k=3, s=1)"

    # Case 3: kernel=1, stride=1 -> no padding, fast path returns x unchanged.
    y3 = jax.block_until_ready(conv2d_same_pad(x, 1, 1))
    assert y3.shape == x.shape and jnp.allclose(y3, x), "fast path mismatch"

    print("KERNEL_OK")
</pallas_src>

<mosaic_0001>
module attributes {stable_mosaic.version = 11 : i64} {
  func.func @pad_kernel(%arg0: i32, %arg1: memref<4x16x16xf32, #tpu.memory_space<vmem>>, %arg2: memref<4x17x17xf32, #tpu.memory_space<vmem>>) attributes {dimension_semantics = [#tpu.dimension_semantics<parallel>], iteration_bounds = array<i64: 2>, scalar_prefetch = 0 : i64, scratch_operands = 0 : i64, tpu.core_type = #tpu.core_type<tc>, window_params = [{transform_indices = @transform_0, window_bounds = array<i64: 4, 16, 16>}, {transform_indices = @transform_1, window_bounds = array<i64: 4, 17, 17>}]} {
    %c0 = arith.constant 0 : index
    %c0_0 = arith.constant 0 : index
    %c0_1 = arith.constant 0 : index
    %0 = vector.load %arg1[%c0, %c0_0, %c0_1] : memref<4x16x16xf32, #tpu.memory_space<vmem>>, vector<4x16x16xf32>
    %cst = arith.constant 0.000000e+00 : f32
    %1 = vector.broadcast %cst : f32 to vector<4x16x1xf32>
    %2 = tpu.concatenate %0, %1 in 2 : vector<4x16x16xf32>, vector<4x16x1xf32> -> vector<4x16x17xf32>
    %cst_2 = arith.constant 0.000000e+00 : f32
    %3 = vector.broadcast %cst_2 : f32 to vector<4x1x17xf32>
    %4 = tpu.concatenate %2, %3 in 1 : vector<4x16x17xf32>, vector<4x1x17xf32> -> vector<4x17x17xf32>
    %c0_3 = arith.constant 0 : index
    %c0_4 = arith.constant 0 : index
    %c0_5 = arith.constant 0 : index
    %5 = vector.load %arg2[%c0_3, %c0_4, %c0_5] : memref<4x17x17xf32, #tpu.memory_space<vmem>>, vector<4x17x17xf32>
    tpu.vector_store %arg2[%c0_3, %c0_4, %c0_5], %4 {strides = array<i32>} : memref<4x17x17xf32, #tpu.memory_space<vmem>>, vector<4x17x17xf32>,
    return
  }
  func.func @transform_0(%arg0: i32) -> (i32, i32, i32) {
    %c0_i32 = arith.constant 0 : i32
    %c0_i32_0 = arith.constant 0 : i32
    %c0_i32_1 = arith.constant 0 : i32
    return %arg0, %c0_i32, %c0_i32_0 : i32, i32, i32
  }
  func.func @transform_1(%arg0: i32) -> (i32, i32, i32) {
    %c0_i32 = arith.constant 0 : i32
    %c0_i32_0 = arith.constant 0 : i32
    %c0_i32_1 = arith.constant 0 : i32
    return %arg0, %c0_i32, %c0_i32_0 : i32, i32, i32
  }
}

</mosaic_0001>

<llo_original>
// kernel: tpu_custom_call.1
$region0: #{tpu_custom_call.1}
  #allocation0 [shape = 'u32[]', space=smem, size = 0x4, offset = 0x4, fixed_abs, tag = 'smem constant byte address 0x4 - core index']
  #allocation1 [shape = 'u32[144,128]{1,0:T(1,128)}', space=vmem, size = 0x12000, scoped, tag = 'internal scratch']
  %s0 = inlined_call_operand.hbm [shape: f32[8,16,16], index: 0, kind: input, shape index: {}]
  %s1 = inlined_call_operand.vmem [shape: f32[8,17,17], index: 1, kind: output, shape index: {}]
  %s2 = sld [smem:[#allocation0]]
  $region41: #{tpu_custom_call.1} parent=0
    _
  %s4 = ssub.s32 1, %s2
  %s5 = scalar_select 0, %s4, %s2
  $region1: #{tpu_custom_call.1} parent=0
    #allocation2 [shape = 'u8[65536]{0}', space=vmem, size = 0x10000, scoped, tag = 'input window, operand 0']
    #allocation3 [shape = 's32[2]{0}', space=sflag, size = 0x8, scoped, tag = 'scoped memory for tpu_custom_call.1']
    %6 = vsyncpa [#allocation3], 0
    %s7 = scalar_lea.sflag [#allocation3], 1
    %8 = vsyncpa %s7, 0
    loop: start=0, step=1, limit=4
    $region2: #{tpu_custom_call.1} parent=1 // loop_pre_header
      _
    $region3: #{tpu_custom_call.1} parent=1 // loop_header
      %s10 = sphi 0, %s14
      %p11 = scmp.ge.s32.totalorder %s10, 4
      %s20 = sphi 0, %s22
      %s23 = sphi 0, %s20
      %s24 = sphi 0, %s23
      %s40 = sphi 0, %s24
      %s46 = sphi 0, %s48
      %s49 = sphi 0, %s46
      %s50 = sphi 0, %s49
      %s66 = sphi 0, %s50
    $region4: #{tpu_custom_call.1} parent=1 // loop_header_branch
      %13 = sbr.rel (%p11) target = $region8
    $region5: #{tpu_custom_call.1} parent=1 // loop_body
      %s15 = ssub.s32 %s10, 1
      %s16 = ssub.s32 %s10, 2
      %s17 = sadd.s32 %s10, 1
      %s18 = ssub.s32 %s10, %s17
      %p19 = scmp.eq.s32.totalorder %s18, 0
      %s21 = sadd.s32 %s20, 1
      %s22 = scalar_select %p19, %s20, %s21
      %p25 = pneg %p19
      %p26 = scmp.eq.s32.totalorder %s10, 1
      %p27 = por %p25, %p26
      %p28 = scmp.ne.s32.totalorder %s20, %s23
      %p29 = scmp.eq.s32.totalorder %s10, 0
      %p30 = por %p28, %p29
      %p31 = scmp.ne.s32.totalorder %s20, %s23
      %p32 = scmp.eq.s32.totalorder %s15, 1
      %p33 = por %p31, %p32
      %p34 = scmp.ne.s32.totalorder %s23, %s24
      %p35 = scmp.eq.s32.totalorder %s15, 0
      %p36 = por %p34, %p35
      %p37 = scmp.ne.s32.totalorder %s23, %s24
      %p38 = scmp.eq.s32.totalorder %s16, 1
      %p39 = por %p37, %p38
      %p41 = scmp.ne.s32.totalorder %s24, %s40
      %p42 = scmp.eq.s32.totalorder %s16, 0
      %p43 = por %p41, %p42
      %s44 = ssub.s32 %s10, %s17
      %p45 = scmp.eq.s32.totalorder %s44, 0
      %s47 = sadd.s32 %s46, 1
      %s48 = scalar_select %p45, %s46, %s47
      %p51 = pneg %p45
      %p52 = scmp.eq.s32.totalorder %s10, 1
      %p53 = por %p51, %p52
      %p54 = scmp.ne.s32.totalorder %s46, %s49
      %p55 = scmp.eq.s32.totalorder %s10, 0
      %p56 = por %p54, %p55
      %p57 = scmp.ne.s32.totalorder %s46, %s49
      %p58 = scmp.eq.s32.totalorder %s15, 1
      %p59 = por %p57, %p58
      %p60 = scmp.ne.s32.totalorder %s49, %s50
      %p61 = scmp.eq.s32.totalorder %s15, 0
      %p62 = por %p60, %p61
      %p63 = scmp.ne.s32.totalorder %s49, %s50
      %p64 = scmp.eq.s32.totalorder %s16, 1
      %p65 = por %p63, %p64
      %p67 = scmp.ne.s32.totalorder %s50, %s66
      %p68 = scmp.eq.s32.totalorder %s16, 0
      %p69 = por %p67, %p68
      %p70 = scmp.le.s32.totalorder 1, %s10
      %p71 = scmp.lt.s32.totalorder %s10, 3
      %p72 = pnand %p70, %p71
      %p73 = pneg %p72
      // Predicated region
      $region9: #{tpu_custom_call.1} parent=5 // pred_check
        _
      $region10: #{tpu_custom_call.1} parent=5 // pred_check_branch
        %75 = sbr.rel (%p72) target = $region12
      $region11: #{tpu_custom_call.1} parent=5 // pred_region
        %s76 = ssub.s32 %s10, 1
      $region12: #{tpu_custom_call.1} parent=5 // pred_fallthru
        _
      %p77 = scmp.lt.s32.totalorder %s10, 2
      // Predicated region
      $region13: #{tpu_custom_call.1} parent=5 // pred_check
        %p78 = pneg %p77
      $region14: #{tpu_custom_call.1} parent=5 // pred_check_branch
        %80 = sbr.rel (%p78) target = $region16
      $region15: #{tpu_custom_call.1} parent=5 // pred_region
        // Predicated region
        $region17: #{tpu_custom_call.1} parent=15 // pred_check
          %p81 = pneg %p30
        $region18: #{tpu_custom_call.1} parent=15 // pred_check_branch
          %83 = sbr.rel (%p81) target = $region20
        $region19: #{tpu_custom_call.1} parent=15 // pred_region
          %s84 = sand.u32 %s20, 1
          %s85 = scalar_lea.sflag [#allocation3], %s84
          %s86 = sand.u32 %s20, 1
          %s87 = smul.addr %s86, 64
          %s88 = scalar_lea.vmem [#allocation2], %s87
          %s89 = smul.u32 4, %s10
          %s91 = ssub.s32 1024, 1024
          %92 = vsyncadd %s85, %s91
          %s93 = smul.addr %s89, 2
          %s94 = smul.addr %s93, 128
          %s95 = scalar_lea.hbm %s0, %s94
          %s96 = sshll.u32 %s88, 4
          %s97 = int_to_ptr.vmem [resolvable:$true] %s96
          %102 = dma.hbm_to_vmem [thread:$0]  %s95, 1024, %s97, %s85, 128, 128, 8
        $region20: #{tpu_custom_call.1} parent=15 // pred_fallthru
          _
      $region16: #{tpu_custom_call.1} parent=5 // pred_fallthru
        _
      %p103 = scmp.le.s32.totalorder 1, %s10
      %p104 = scmp.lt.s32.totalorder %s10, 3
      %p105 = pnand %p103, %p104
      %p106 = pneg %p105
      // Predicated region
      $region21: #{tpu_custom_call.1} parent=5 // pred_check
        _
      $region22: #{tpu_custom_call.1} parent=5 // pred_check_branch
        %108 = sbr.rel (%p105) target = $region24
      $region23: #{tpu_custom_call.1} parent=5 // pred_region
        %s109 = ssub.s32 %s10, 1
        %s110 = sand.u32 %s23, 1
        %s111 = scalar_lea.sflag [#allocation3], %s110
        %s112 = sand.u32 %s23, 1
        %s113 = smul.addr %s112, 64
        %s114 = scalar_lea.vmem [#allocation2], %s113
        // Predicated region
        $region25: #{tpu_custom_call.1} parent=23 // pred_check
          %p115 = pneg %p36
        $region26: #{tpu_custom_call.1} parent=23 // pred_check_branch
          %117 = sbr.rel (%p115) target = $region28
        $region27: #{tpu_custom_call.1} parent=23 // pred_region
          %118 = dma.done %s111, 1024
        $region28: #{tpu_custom_call.1} parent=23 // pred_fallthru
          _
        %s119 = sand.u32 %s23, 1
        %s120 = scalar_lea.sflag [#allocation3], %s119
        %s121 = sand.u32 %s23, 1
        %s122 = smul.addr %s121, 64
        %s123 = scalar_lea.vmem [#allocation2], %s122
        %p124 = pneg %p36
        %p125 = pneg %p33
        %p126 = pneg %p62
        %p127 = pneg %p59
        %s128 = smul.u32 4, %s15
        %p129 = scmp.lt.s32.totalorder %s128, 7
        %s130 = scalar_select %p129, %s128, 7
        %s131 = smul.addr %s130, 3
        %s132 = smul.addr %s131, 8
        %s133 = scalar_lea.vmem %s1, %s132
        %s134 = smul.u32 4, %s15
        %s135 = smul.u32 4, %s15
        %p136 = scmp.lt.s32.totalorder %s135, 7
        %s137 = scalar_select %p136, %s135, 7
        %s138 = smul.addr %s137, 3
        %s139 = smul.addr %s138, 8
        %s140 = scalar_lea.vmem %s1, %s139
        %s141 = smul.u32 4, %s15
        %v142 = vld [vmem:[%s114] sm:$0xff]
        %v143 = vld [vmem:[%s114 + $0x8] sm:$0xff]
        %v144 = vld [vmem:[%s114 + $0x10] sm:$0xff]
        %v145 = vld [vmem:[%s114 + $0x18] sm:$0xff]
        %v146 = vld [vmem:[%s114 + $0x20] sm:$0xff]
        %v147 = vld [vmem:[%s114 + $0x28] sm:$0xff]
        %v148 = vld [vmem:[%s114 + $0x30] sm:$0xff]
        %v149 = vld [vmem:[%s114 + $0x38] sm:$0xff]
        %vm150 = vcmask 130048
        %v151 = vsel %vm150, %v142, 0.0
        %v152 = vsel %vm150, %v143, 0.0
        %v153 = vsel %vm150, %v144, 0.0
        %v154 = vsel %vm150, %v145, 0.0
        %v155 = vsel %vm150, %v146, 0.0
        %v156 = vsel %vm150, %v147, 0.0
        %v157 = vsel %vm150, %v148, 0.0
        %v158 = vsel %vm150, %v149, 0.0
        %vm159 = vcmask 138240
        %160 = vst.msk [vmem:[%s140] sm:$0xff] %vm159, %v151
        %161 = vst.msk [vmem:[%s140 + $0x8] sm:$0xff] %vm159, %v152
        %vm162 = vcmask 131072
        %163 = vst.msk [vmem:[%s140 + $0x10] sm:$0x1] %vm162, 0.0
        %164 = vst.msk [vmem:[%s140 + $0x18] sm:$0xff] %vm159, %v153
        %165 = vst.msk [vmem:[%s140 + $0x20] sm:$0xff] %vm159, %v154
        %166 = vst.msk [vmem:[%s140 + $0x28] sm:$0x1] %vm162, 0.0
        %167 = vst.msk [vmem:[%s140 + $0x30] sm:$0xff] %vm159, %v155
        %168 = vst.msk [vmem:[%s140 + $0x38] sm:$0xff] %vm159, %v156
        %169 = vst.msk [vmem:[%s140 + $0x40] sm:$0x1] %vm162, 0.0
        %170 = vst.msk [vmem:[%s140 + $0x48] sm:$0xff] %vm159, %v157
        %171 = vst.msk [vmem:[%s140 + $0x50] sm:$0xff] %vm159, %v158
        %172 = vst.msk [vmem:[%s140 + $0x58] sm:$0x1] %vm162, 0.0
        %s173 = smul.u32 4, %s15
        %p174 = scmp.lt.s32.totalorder %s173, 7
        %s175 = scalar_select %p174, %s173, 7
        %s176 = smul.addr %s175, 3
        %s177 = smul.addr %s176, 8
        %s178 = scalar_lea.vmem %s1, %s177
        // Predicated region
        $region29: #{tpu_custom_call.1} parent=23 // pred_check
          %p179 = pneg %p59
        $region30: #{tpu_custom_call.1} parent=23 // pred_check_branch
          %181 = sbr.rel (%p179) target = $region32
        $region31: #{tpu_custom_call.1} parent=23 // pred_region
          %s182 = smul.u32 4, %s15
        $region32: #{tpu_custom_call.1} parent=23 // pred_fallthru
          _
      $region24: #{tpu_custom_call.1} parent=5 // pred_fallthru
        _
      %p183 = scmp.le.s32.totalorder 2, %s10
      // Predicated region
      $region33: #{tpu_custom_call.1} parent=5 // pred_check
        %p184 = pneg %p183
      $region34: #{tpu_custom_call.1} parent=5 // pred_check_branch
        %186 = sbr.rel (%p184) target = $region36
      $region35: #{tpu_custom_call.1} parent=5 // pred_region
        %s187 = ssub.s32 %s10, 2
        // Predicated region
        $region37: #{tpu_custom_call.1} parent=35 // pred_check
          %p188 = pneg %p65
        $region38: #{tpu_custom_call.1} parent=35 // pred_check_branch
          %190 = sbr.rel (%p188) target = $region40
        $region39: #{tpu_custom_call.1} parent=35 // pred_region
          %s191 = smul.u32 4, %s16
          %p192 = scmp.lt.s32.totalorder %s191, 7
          %s193 = scalar_select %p192, %s191, 7
          %s194 = smul.addr %s193, 3
          %s195 = smul.addr %s194, 8
          %s196 = scalar_lea.vmem %s1, %s195
        $region40: #{tpu_custom_call.1} parent=35 // pred_fallthru
          _
      $region36: #{tpu_custom_call.1} parent=5 // pred_fallthru
        _
    $region6: #{tpu_custom_call.1} parent=1 // loop_footer
      %s14 = sadd.s32 1, %s10
    $region7: #{tpu_custom_call.1} parent=1 // loop_footer_branch
      %9 = sbr.rel target = $region3
    $region8: #{tpu_custom_call.1} parent=1 // loop_exit
      _
    %197 = vsyncpa [#allocation3], 1
    %s198 = scalar_lea.sflag [#allocation3], 1
    %199 = vsyncpa %s198, 1

</llo_original>
